<compile_context>
chip_gen: v7x
topology: tpu7x:2x2x1
jax: 0.10.0
libtpu: 0.0.40
codegen_flags: <defaults>
</compile_context>

<pallas_src>
import jax
import jax.numpy as jnp
from jax.experimental import pallas as pl
from jax.experimental.pallas import tpu as pltpu


def conv1x1_relu_kernel(x_ref, w_ref, b_ref, o_ref):
    """o = relu(W_blkdiag @ x + b), spatial (H*W) on lanes.

    x_ref: (N*C_in,  H*W)     VMEM  -- pure reshape of the NCHW input
    w_ref: (N*C_out, N*C_in)  VMEM  -- block-diagonal 1x1 conv weight
    b_ref: (N*C_out, 1)       VMEM  -- bias column, tiled over batch
    o_ref: (N*C_out, H*W)     VMEM  -- pure reshape of the NCHW output
    """
    acc = jnp.dot(w_ref[...], x_ref[...], preferred_element_type=jnp.float32)
    acc = acc + b_ref[...]                      # single lane-broadcast add
    o_ref[...] = jnp.maximum(acc, 0.0).astype(o_ref.dtype)


def augment_wrapper_forward(x_nchw, weight, bias):
    """Equivalent of AugmentWrapper(module).forward(x) where module is the
    deterministic Conv2d(1x1)+ReLU stand-in.

    x_nchw : (N, C_in, H, W) float32
    weight : (C_out, C_in, 1, 1) float32  (PyTorch Conv2d weight layout)
    bias   : (C_out,) float32
    returns: (N, C_out, H, W) float32 (NCHW, matching PyTorch semantics)
    """
    N, C_in, H, W = x_nchw.shape
    C_out = weight.shape[0]
    HW = H * W

    # Glue: pure reshapes only (no transposes). Static/tiny weight prep is done
    # once in XLA, outside the kernel.
    x_2d = x_nchw.reshape(N * C_in, HW)                       # (8, 256)
    w_mat = weight.reshape(C_out, C_in).astype(x_nchw.dtype)  # (8, 4)
    # Block-diagonal weight so x stays a pure reshape: (N*C_out, N*C_in).
    w_blkdiag = jnp.kron(jnp.eye(N, dtype=x_nchw.dtype), w_mat)   # (16, 8)
    b_col = jnp.tile(bias.astype(x_nchw.dtype), N).reshape(N * C_out, 1)

    bytes_accessed = (x_2d.size + N * C_out * HW + w_blkdiag.size + b_col.size) * 4
    cost = pl.CostEstimate(
        flops=2 * N * HW * C_in * C_out,
        transcendentals=0,
        bytes_accessed=bytes_accessed,
    )

    out_2d = pl.pallas_call(
        conv1x1_relu_kernel,
        out_shape=jax.ShapeDtypeStruct((N * C_out, HW), x_nchw.dtype),
        in_specs=[
            pl.BlockSpec(memory_space=pltpu.MemorySpace.VMEM),
            pl.BlockSpec(memory_space=pltpu.MemorySpace.VMEM),
            pl.BlockSpec(memory_space=pltpu.MemorySpace.VMEM),
        ],
        out_specs=pl.BlockSpec(memory_space=pltpu.MemorySpace.VMEM),
        cost_estimate=cost,
    )(x_2d, w_blkdiag, b_col)

    # Glue: pure reshape back to NCHW.
    return out_2d.reshape(N, C_out, H, W)


def reference_forward(x_nchw, weight, bias):
    """Pure-JAX reference for the same stand-in module (1x1 conv + ReLU)."""
    C_out, C_in = weight.shape[0], weight.shape[1]
    w = weight.reshape(C_out, C_in)
    y = jnp.einsum("nchw,oc->nohw", x_nchw, w) + bias[None, :, None, None]
    return jnp.maximum(y, 0.0)


if __name__ == "__main__":
    key = jax.random.PRNGKey(0)
    k_x, k_w, k_b = jax.random.split(key, 3)

    N, C_in, H, W = 2, 4, 16, 16
    C_out = 8

    x = jax.random.normal(k_x, (N, C_in, H, W), dtype=jnp.float32)
    # Deterministic synthetic parameters (Conv2d(4, 8, kernel_size=1) shapes).
    weight = jax.random.normal(k_w, (C_out, C_in, 1, 1), dtype=jnp.float32) * 0.1
    bias = jax.random.normal(k_b, (C_out,), dtype=jnp.float32) * 0.1

    out = augment_wrapper_forward(x, weight, bias)
    out = jax.block_until_ready(out)

    ref = reference_forward(x, weight, bias)
    assert out.shape == (N, C_out, H, W), out.shape
    assert jnp.allclose(out, ref, atol=1e-5, rtol=1e-5), "mismatch vs reference"

    print("KERNEL_OK")
</pallas_src>

<mosaic_0001>
module attributes {stable_mosaic.version = 11 : i64} {
  func.func @conv1x1_relu_kernel(%arg0: memref<8x256xf32, #tpu.memory_space<vmem>>, %arg1: memref<16x8xf32, #tpu.memory_space<vmem>>, %arg2: memref<16x1xf32, #tpu.memory_space<vmem>>, %arg3: memref<16x256xf32, #tpu.memory_space<vmem>>) attributes {dimension_semantics = [], scalar_prefetch = 0 : i64, scratch_operands = 0 : i64, tpu.core_type = #tpu.core_type<tc>} {
    %c0 = arith.constant 0 : index
    %c0_0 = arith.constant 0 : index
    %0 = vector.load %arg1[%c0, %c0_0] : memref<16x8xf32, #tpu.memory_space<vmem>>, vector<16x8xf32>
    %c0_1 = arith.constant 0 : index
    %c0_2 = arith.constant 0 : index
    %1 = vector.load %arg0[%c0_1, %c0_2] : memref<8x256xf32, #tpu.memory_space<vmem>>, vector<8x256xf32>
    %cst = arith.constant dense<0.000000e+00> : vector<16x256xf32>
    %2 = tpu.matmul %0, %1, %cst {dimension_numbers = #tpu.dot_dimension_numbers<[1], [0], [0], [1], [0, 0, 1, 1], [], []>} : vector<16x8xf32>, vector<8x256xf32>, vector<16x256xf32> -> vector<16x256xf32>
    %c0_3 = arith.constant 0 : index
    %c0_4 = arith.constant 0 : index
    %3 = vector.load %arg2[%c0_3, %c0_4] : memref<16x1xf32, #tpu.memory_space<vmem>>, vector<16x1xf32>
    %4 = vector.broadcast %3 : vector<16x1xf32> to vector<16x256xf32>
    %5 = arith.addf %2, %4 : vector<16x256xf32>
    %cst_5 = arith.constant 0.000000e+00 : f32
    %6 = vector.broadcast %cst_5 : f32 to vector<16x256xf32>
    %7 = arith.maximumf %5, %6 : vector<16x256xf32>
    %c0_6 = arith.constant 0 : index
    %c0_7 = arith.constant 0 : index
    %8 = vector.load %arg3[%c0_6, %c0_7] : memref<16x256xf32, #tpu.memory_space<vmem>>, vector<16x256xf32>
    tpu.vector_store %arg3[%c0_6, %c0_7], %7 {strides = array<i32>} : memref<16x256xf32, #tpu.memory_space<vmem>>, vector<16x256xf32>,
    return
  }
}

</mosaic_0001>

<llo_original>
// kernel: tpu_custom_call.1
$region0: #{tpu_custom_call.1}
  #allocation0 [shape = 'u32[]', space=smem, size = 0x4, offset = 0x4, fixed_abs, tag = 'smem constant byte address 0x4 - core index']
  #allocation1 [shape = 'u32[144,128]{1,0:T(1,128)}', space=vmem, size = 0x12000, scoped, tag = 'internal scratch']
  %s0 = inlined_call_operand.vmem [shape: f32[8,256], index: 0, kind: input, shape index: {}]
  %s1 = inlined_call_operand.vmem [shape: f32[16,8], index: 1, kind: input, shape index: {}]
  %s2 = inlined_call_operand.vmem [shape: f32[16,1], index: 2, kind: input, shape index: {}]
  %s3 = inlined_call_operand.hbm [shape: f32[16,256], index: 3, kind: output, shape index: {}]
  %s4 = sld [smem:[#allocation0]]
  $region22: #{tpu_custom_call.1} parent=0
    _
  %s6 = ssub.s32 1, %s4
  %s7 = scalar_select 0, %s6, %s4
  $region1: #{tpu_custom_call.1} parent=0
    #allocation2 [shape = 'u8[16384]{0}', space=vmem, size = 0x4000, scoped, tag = 'output window, operand 0, single buffered']
    #allocation3 [shape = 's32[1]{0}', space=sflag, size = 0x4, scoped, tag = 'scoped memory for tpu_custom_call.1']
    %8 = vsyncpa [#allocation3], 0
    // Predicated region
    $region2: #{tpu_custom_call.1} parent=1 // pred_check
      _
    $region3: #{tpu_custom_call.1} parent=1 // pred_check_branch
      %10 = sbr.rel (0) target = $region5
    $region4: #{tpu_custom_call.1} parent=1 // pred_region
      _
    $region5: #{tpu_custom_call.1} parent=1 // pred_fallthru
      _
    // Predicated region
    $region6: #{tpu_custom_call.1} parent=1 // pred_check
      _
    $region7: #{tpu_custom_call.1} parent=1 // pred_check_branch
      %12 = sbr.rel (0) target = $region9
    $region8: #{tpu_custom_call.1} parent=1 // pred_region
      _
    $region9: #{tpu_custom_call.1} parent=1 // pred_fallthru
      _
    // Predicated region
    $region10: #{tpu_custom_call.1} parent=1 // pred_check
      _
    $region11: #{tpu_custom_call.1} parent=1 // pred_check_branch
      %14 = sbr.rel (0) target = $region13
    $region12: #{tpu_custom_call.1} parent=1 // pred_region
      _
    $region13: #{tpu_custom_call.1} parent=1 // pred_fallthru
      _
    %v15 = vld [vmem:[%s1] sm:$0xff]
    %v16 = vld [vmem:[%s1 + $0x8] sm:$0xff]
    %v17 = vld [vmem:[%s0] sm:$0xff]
    %v18 = vld [vmem:[%s0 + $0x8] sm:$0xff]
    %v19 = vld [vmem:[%s2] sm:$0xff]
    %v20 = vld [vmem:[%s2 + $0x8] sm:$0xff]
    %22 = vset.pattern.permute.xlu0 0
    %23 = vperm.xlu0 %22, %v19
    %v24 = vpop.permute.xlu0 %23
    %27 = vset.pattern.permute.xlu0 0
    %28 = vperm.xlu0 %27, %v20
    %v29 = vpop.permute.xlu0 %28
    %vm31 = vcmask 64512
    %v33 = vsel %vm31, %v15, 0
    %v36 = vsel %vm31, %v16, 0
    %38 = vmatprep.subr.mxu0 %v18
    %39 = vmatpush1.msra.mxu0 %v17
    %40 = vmatprep.subr.mxu0 0.0
    %41 = vmatpush1.msra.mxu0 0.0
    %42 = vmatprep.subr.mxu0 0.0
    %43 = vmatpush1.msra.mxu0 0.0
    %44 = vmatprep.subr.mxu0 0.0
    %45 = vmatpush1.msra.mxu0 0.0
    %46 = vmatprep.subr.mxu0 0.0
    %47 = vmatpush1.msra.mxu0 0.0
    %48 = vmatprep.subr.mxu0 0.0
    %49 = vmatpush1.msra.mxu0 0.0
    %50 = vmatprep.subr.mxu0 0.0
    %51 = vmatpush1.msra.mxu0 0.0
    %52 = vmatprep.subr.mxu0 0.0
    %53 = vmatpush1.msra.mxu0 0.0
    %54 = vmatprep.subr.mxu0 0.0
    %55 = vmatpush1.msra.mxu0 0.0
    %56 = vmatprep.subr.mxu0 0.0
    %57 = vmatpush1.msra.mxu0 0.0
    %58 = vmatprep.subr.mxu0 0.0
    %59 = vmatpush1.msra.mxu0 0.0
    %60 = vmatprep.subr.mxu0 0.0
    %61 = vmatpush1.msra.mxu0 0.0
    %62 = vmatprep.subr.mxu0 0.0
    %63 = vmatpush1.msra.mxu0 0.0
    %64 = vmatprep.subr.mxu0 0.0
    %65 = vmatpush1.msra.mxu0 0.0
    %66 = vmatprep.subr.mxu0 0.0
    %67 = vmatpush1.msra.mxu0 0.0
    %68 = vmatprep.subr.mxu0 0.0
    %69 = vmatpush1.msra.mxu0 0.0
    %70 = vmatprep.subr.mxu0 0.0
    %71 = vmatpush1.msra.mxu0 0.0
    %72 = vmatprep.subr.mxu0 0.0
    %73 = vmatpush1.msra.mxu0 0.0
    %74 = vmatprep.subr.mxu0 0.0
    %75 = vmatpush1.msra.mxu0 0.0
    %76 = vmatprep.subr.mxu0 0.0
    %77 = vmatpush1.msra.mxu0 0.0
    %78 = vmatprep.subr.mxu0 0.0
    %79 = vmatpush1.msra.mxu0 0.0
    %80 = vmatprep.subr.mxu0 0.0
    %81 = vmatpush1.msra.mxu0 0.0
    %82 = vmatprep.subr.mxu0 0.0
    %83 = vmatpush1.msra.mxu0 0.0
    %84 = vmatprep.subr.mxu0 0.0
    %85 = vmatpush1.msra.mxu0 0.0
    %86 = vmatprep.subr.mxu0 0.0
    %87 = vmatpush1.msra.mxu0 0.0
    %88 = vmatprep.subr.mxu0 0.0
    %89 = vmatpush1.msra.mxu0 0.0
    %90 = vmatprep.subr.mxu0 0.0
    %91 = vmatpush1.msra.mxu0 0.0
    %92 = vmatprep.subr.mxu0 0.0
    %93 = vmatpush1.msra.mxu0 0.0
    %94 = vmatprep.subr.mxu0 0.0
    %95 = vmatpush1.msra.mxu0 0.0
    %96 = vmatprep.subr.mxu0 0.0
    %97 = vmatpush1.msra.mxu0 0.0
    %98 = vmatprep.subr.mxu0 0.0
    %99 = vmatpush1.msra.mxu0 0.0
    %100 = vmatprep.subr.mxu0 0.0
    %101 = vmatpush1.msra.mxu0 0.0
    %102 = vmatprep.mubr.f32.mxu0 0.0
    %103 = vmatmul.mubr.f32.gmra.mrb[0].mxu0 %v33
    %v104 = vpop.f32.mrb[0].mxu0
    %v105 = vadd.f32 %v24, %v104
    %v106 = vpop.f32.mrb[0].mxu0
    %v107 = vadd.f32 %v24, %v106
    %108 = vmatprep.mubr.f32.mxu0 0.0
    %109 = vmatmul.mubr.f32.gmra.mrb[0].mxu0 %v36
    %v110 = vpop.f32.mrb[0].mxu0
    %v111 = vadd.f32 %v29, %v110
    %v112 = vpop.f32.mrb[0].mxu0
    %v113 = vadd.f32 %v29, %v112
    %114 = vdwg.mxu0
    %v115 = vmax.f32 %v105, 0.0
    %v116 = vmax.f32 %v107, 0.0
    %v117 = vmax.f32 %v111, 0.0
    %v118 = vmax.f32 %v113, 0.0
    %119 = vst [vmem:[#allocation2] sm:$0xff] %v115
    %120 = vst [vmem:[#allocation2 + $0x8] sm:$0xff] %v116
    %121 = vst [vmem:[#allocation2 + $0x10] sm:$0xff] %v117
    %122 = vst [vmem:[#allocation2 + $0x18] sm:$0xff] %v118
    // Predicated region
    $region14: #{tpu_custom_call.1} parent=1 // pred_check
      _
    $region15: #{tpu_custom_call.1} parent=1 // pred_check_branch
      %124 = sbr.rel (0) target = $region17
    $region16: #{tpu_custom_call.1} parent=1 // pred_region
      %s126 = ssub.s32 512, 512
      %127 = vsyncadd [#allocation3], %s126
      %s128 = sshll.u32 [#allocation2], 4
      %s129 = int_to_ptr.vmem [resolvable:$true] %s128
      %134 = dma.vmem_to_hbm [thread:$0]  %s129, 512, %s3, [#allocation3], 256, 256, 16
    $region17: #{tpu_custom_call.1} parent=1 // pred_fallthru
      _
    // Predicated region
    $region18: #{tpu_custom_call.1} parent=1 // pred_check
      _
    $region19: #{tpu_custom_call.1} parent=1 // pred_check_branch
      %136 = sbr.rel (0) target = $region21
    $region20: #{tpu_custom_call.1} parent=1 // pred_region
      %137 = dma.done [#allocation3], 512
    $region21: #{tpu_custom_call.1} parent=1 // pred_fallthru
      _
    %138 = vsyncpa [#allocation3], 1

</llo_original>
